<compile_context>
chip_gen: v6e
topology: v6e:2x2x1
jax: 0.10.0
libtpu: 0.0.40
codegen_flags: <defaults>
</compile_context>

<pallas_src>
import functools

import jax
import jax.numpy as jnp
from jax.experimental import pallas as pl
from jax.experimental.pallas import tpu as pltpu


# ---------------------------------------------------------------------------
# Fused single-pass kernel (batch-tiled).
# ---------------------------------------------------------------------------
def _fused_kernel(x1_ref, x2_ref, w_red_ref, w_sel1_ref, w_sel2_ref,
                  o1_ref, o2_ref, *, inv_hw):
    # x1/x2/o* : (Bt, C, HW)  -- HW on lanes, C on sublanes.
    # w_red    : (C, A),  w_sel1 / w_sel2 : (A, C).
    x1 = x1_ref[...]
    x2 = x2_ref[...]

    # Spatial mean: two f32-accumulated lane reductions (no full-block f32
    # temporaries), then a compile-time 1/HW scale.
    s = (jnp.sum(x1, axis=-1, dtype=jnp.float32) +
         jnp.sum(x2, axis=-1, dtype=jnp.float32)) * inv_hw          # (Bt, C)

    # fc_reduce (1x1 conv == channel matmul) + ReLU -> (Bt, A).
    r = jnp.maximum(
        jnp.dot(s, w_red_ref[...], preferred_element_type=jnp.float32), 0.0)

    # fc_select, pre-split per path (no lane-boundary slicing) -> (Bt, C).
    a1 = jax.nn.sigmoid(
        jnp.dot(r, w_sel1_ref[...], preferred_element_type=jnp.float32))
    a2 = jax.nn.sigmoid(
        jnp.dot(r, w_sel2_ref[...], preferred_element_type=jnp.float32))

    # Gate in the input dtype (keeps the dominant elementwise op on the
    # narrow VPU path for bf16 inputs); broadcast along the lane (HW) axis.
    o1_ref[...] = (x1 * a1.astype(x1.dtype)[:, :, None]).astype(o1_ref.dtype)
    o2_ref[...] = (x2 * a2.astype(x2.dtype)[:, :, None]).astype(o2_ref.dtype)


def _pick_batch_tile(batch, per_batch_bytes, target_bytes):
    """Batch-tile size chosen purely by bytes (cdiv grid, no divisor-of-B
    requirement), preferring >= 4 (even) grid steps so each v7x TensorCore
    gets >= 2 pipelined steps."""
    cap = int(max(1, min(batch, target_bytes // max(per_batch_bytes, 1))))
    steps = lambda bt: -(-batch // bt)
    want = min(4, batch)
    for bt in range(cap, 0, -1):
        if steps(bt) >= want and steps(bt) % 2 == 0:
            return bt
    for bt in range(cap, 0, -1):
        if steps(bt) >= want:
            return bt
    return cap


def _vmem_limit(block_bytes):
    # 2 in + 2 out operands, double-buffered, plus weights / in-body temps.
    # Capped at 48 MiB so the same setting is safe on v7x (64 MiB physical
    # VMEM per core) while still overriding v5e's 16 MiB default scope.
    return int(min(48 << 20, max(32 << 20, 8 * block_bytes + (8 << 20))))


def _run_fused(x1v, x2v, w_red_t, w_sel1_t, w_sel2_t, *, block_bytes_target):
    B, C, HW = x1v.shape
    A = w_red_t.shape[1]
    itemsize = x1v.dtype.itemsize
    per_batch_bytes = C * HW * itemsize

    b_tile = _pick_batch_tile(B, per_batch_bytes, block_bytes_target)
    grid = (pl.cdiv(B, b_tile),)
    block_bytes = b_tile * per_batch_bytes

    data_spec = pl.BlockSpec((b_tile, C, HW), lambda b: (b, 0, 0))
    cost = pl.CostEstimate(
        flops=4 * B * C * HW + 6 * B * C * A,
        transcendentals=2 * B * C,
        bytes_accessed=4 * B * C * HW * itemsize)

    kernel = functools.partial(_fused_kernel, inv_hw=1.0 / HW)
    return pl.pallas_call(
        kernel,
        out_shape=(jax.ShapeDtypeStruct((B, C, HW), x1v.dtype),
                   jax.ShapeDtypeStruct((B, C, HW), x2v.dtype)),
        grid_spec=pltpu.PrefetchScalarGridSpec(
            num_scalar_prefetch=0,
            grid=grid,
            in_specs=[
                data_spec,
                data_spec,
                pl.BlockSpec((C, A), lambda b: (0, 0)),
                pl.BlockSpec((A, C), lambda b: (0, 0)),
                pl.BlockSpec((A, C), lambda b: (0, 0)),
            ],
            out_specs=[data_spec, data_spec],
        ),
        compiler_params=pltpu.CompilerParams(
            dimension_semantics=("parallel",),
            vmem_limit_bytes=_vmem_limit(block_bytes)),
        cost_estimate=cost,
    )(x1v, x2v, w_red_t, w_sel1_t, w_sel2_t)


def _run_two_pass(x1v, x2v, w_red_t, w_sel1_t, w_sel2_t, *,
                  block_bytes_target, hw_tile=None):
    """HW-tiled fallback: pass 1 accumulates channel sums, pass 2 scales."""
    B, C, HW = x1v.shape
    A = w_red_t.shape[1]
    itemsize = x1v.dtype.itemsize

    if hw_tile is None:
        hw_tile = max(128,
                      (block_bytes_target // max(C * itemsize, 1)) // 128 * 128)
    hw_tile = int(hw_tile)
    if hw_tile >= HW:
        hw_tile = HW
    assert hw_tile == HW or hw_tile % 128 == 0, "hw_tile must be a 128-multiple"

    n_hw = pl.cdiv(HW, hw_tile)
    grid = (B, n_hw)
    block_bytes = C * hw_tile * itemsize

    data_spec = pl.BlockSpec((1, C, hw_tile), lambda b, h: (b, 0, h))
    sum_spec = pl.BlockSpec((1, 1, C), lambda b, h: (b, 0, 0))

    # ---- Pass 1: per-batch channel sums over the tiled HW axis. ----------
    def _sum_kernel(x1_ref, x2_ref, s_ref):
        h = pl.program_id(1)
        x1 = x1_ref[...]
        x2 = x2_ref[...]
        if HW % hw_tile:
            # Zero the out-of-range lanes of the partial last tile so they
            # do not pollute the channel sums.
            col = jax.lax.broadcasted_iota(jnp.int32, (1, 1, hw_tile), 2)
            valid = col < (HW - h * hw_tile)
            x1 = jnp.where(valid, x1, jnp.zeros_like(x1))
            x2 = jnp.where(valid, x2, jnp.zeros_like(x2))
        partial = (jnp.sum(x1, axis=-1, dtype=jnp.float32) +
                   jnp.sum(x2, axis=-1, dtype=jnp.float32))          # (1, C)

        @pl.when(h == 0)
        def _():
            s_ref[...] = jnp.zeros_like(s_ref)

        s_ref[...] += partial[:, None, :]

    sums = pl.pallas_call(
        _sum_kernel,
        out_shape=jax.ShapeDtypeStruct((B, 1, C), jnp.float32),
        grid_spec=pltpu.PrefetchScalarGridSpec(
            num_scalar_prefetch=0,
            grid=grid,
            in_specs=[data_spec, data_spec],
            out_specs=sum_spec,
        ),
        compiler_params=pltpu.CompilerParams(
            dimension_semantics=("parallel", "arbitrary"),
            vmem_limit_bytes=_vmem_limit(block_bytes)),
        cost_estimate=pl.CostEstimate(
            flops=2 * B * C * HW,
            transcendentals=0,
            bytes_accessed=2 * B * C * HW * itemsize),
    )(x1v, x2v)

    # ---- Pass 2: recompute the (tiny) gate per tile and scale. -----------
    inv_hw = 1.0 / HW

    def _scale_kernel(s_ref, w_red_ref, w_sel1_ref, w_sel2_ref,
                      x1_ref, x2_ref, o1_ref, o2_ref):
        s = s_ref[0] * inv_hw                                        # (1, C)
        r = jnp.maximum(
            jnp.dot(s, w_red_ref[...], preferred_element_type=jnp.float32),
            0.0)
        a1 = jax.nn.sigmoid(
            jnp.dot(r, w_sel1_ref[...], preferred_element_type=jnp.float32))
        a2 = jax.nn.sigmoid(
            jnp.dot(r, w_sel2_ref[...], preferred_element_type=jnp.float32))
        x1 = x1_ref[...]
        x2 = x2_ref[...]
        o1_ref[...] = (x1 * a1.astype(x1.dtype)[:, :, None]).astype(o1_ref.dtype)
        o2_ref[...] = (x2 * a2.astype(x2.dtype)[:, :, None]).astype(o2_ref.dtype)

    return pl.pallas_call(
        _scale_kernel,
        out_shape=(jax.ShapeDtypeStruct((B, C, HW), x1v.dtype),
                   jax.ShapeDtypeStruct((B, C, HW), x2v.dtype)),
        grid_spec=pltpu.PrefetchScalarGridSpec(
            num_scalar_prefetch=0,
            grid=grid,
            in_specs=[
                sum_spec,
                pl.BlockSpec((C, A), lambda b, h: (0, 0)),
                pl.BlockSpec((A, C), lambda b, h: (0, 0)),
                pl.BlockSpec((A, C), lambda b, h: (0, 0)),
                data_spec,
                data_spec,
            ],
            out_specs=[data_spec, data_spec],
        ),
        compiler_params=pltpu.CompilerParams(
            dimension_semantics=("parallel", "parallel"),
            vmem_limit_bytes=_vmem_limit(block_bytes)),
        cost_estimate=pl.CostEstimate(
            flops=2 * B * C * HW + 6 * B * n_hw * C * A,
            transcendentals=2 * B * n_hw * C,
            bytes_accessed=4 * B * C * HW * itemsize),
    )(sums, w_red_t, w_sel1_t, w_sel2_t, x1v, x2v)


def interaction_module(x1, x2, w_reduce, w_select, *,
                       block_bytes_target=3 << 20,
                       max_fused_block_bytes=4 << 20,
                       force_two_pass=False,
                       hw_tile=None):
    """x1/x2: (B, C, H, W) NCHW.  w_reduce: (A, C).  w_select: (2C, A).

    The 1x1-conv weights are passed with the trailing (1, 1) spatial dims
    squeezed out (bias=False in the module).  Torch channel order: rows [:C]
    of w_select gate x1, rows [C:] gate x2.
    """
    B, C, H, W = x1.shape
    HW = H * W
    A = w_reduce.shape[0]
    assert x2.shape == x1.shape
    assert w_reduce.shape == (A, C)
    assert w_select.shape == (2 * C, A)

    # Free, contiguous views -- no transposes, no extra HBM traffic.
    x1v = x1.reshape(B, C, HW)
    x2v = x2.reshape(B, C, HW)

    # Tiny one-off weight prep (outside the hot path).
    w_red_t = jnp.transpose(w_reduce)         # (C, A)
    w_sel1_t = jnp.transpose(w_select[:C])    # (A, C)  gate for x1
    w_sel2_t = jnp.transpose(w_select[C:])    # (A, C)  gate for x2

    per_batch_bytes = C * HW * x1.dtype.itemsize

    if (not force_two_pass) and per_batch_bytes <= max_fused_block_bytes:
        o1, o2 = _run_fused(x1v, x2v, w_red_t, w_sel1_t, w_sel2_t,
                            block_bytes_target=block_bytes_target)
    else:
        o1, o2 = _run_two_pass(x1v, x2v, w_red_t, w_sel1_t, w_sel2_t,
                               block_bytes_target=block_bytes_target,
                               hw_tile=hw_tile)

    # Free reshape back to NCHW.
    return o1.reshape(B, C, H, W), o2.reshape(B, C, H, W)


def _reference(x1, x2, w_reduce, w_select):
    """Pure-JAX reference matching the PyTorch module."""
    s = (x1 + x2).mean(axis=(2, 3), keepdims=True)            # (B, C, 1, 1)
    attn = jnp.einsum('bcij,ac->baij', s, w_reduce)            # fc_reduce
    attn = jnp.maximum(attn, 0.0)
    attn = jnp.einsum('baij,da->bdij', attn, w_select)         # fc_select
    C = attn.shape[1] // 2
    a1 = jax.nn.sigmoid(attn[:, :C])
    a2 = jax.nn.sigmoid(attn[:, C:])
    return x1 * a1, x2 * a2


if __name__ == "__main__":
    key = jax.random.PRNGKey(0)
    k1, k2, k3, k4 = jax.random.split(key, 4)

    # channels=32 -> attn_channels = max(32 // 16, 8) = 8; num_paths = 2.
    B, C, H, W = 2, 32, 16, 16
    A = max(C // 16, 8)

    x1 = jax.random.normal(k1, (B, C, H, W), jnp.float32)
    x2 = jax.random.normal(k2, (B, C, H, W), jnp.float32)
    # Deterministic synthetic 1x1-conv weights (bias=False in the module).
    w_reduce = jax.random.normal(k3, (A, C), jnp.float32) * 0.1      # fc_reduce
    w_select = jax.random.normal(k4, (2 * C, A), jnp.float32) * 0.1  # fc_select

    # 1) Fused single-pass path.
    o1, o2 = interaction_module(x1, x2, w_reduce, w_select)
    jax.block_until_ready((o1, o2))
    r1, r2 = _reference(x1, x2, w_reduce, w_select)
    assert o1.shape == (B, C, H, W) and o2.shape == (B, C, H, W)
    assert jnp.allclose(o1, r1, atol=1e-5, rtol=1e-5)
    assert jnp.allclose(o2, r2, atol=1e-5, rtol=1e-5)

    # 2) Fused path with a partial (cdiv) batch block: B=16, tile=5.
    Bp = 16
    xp1 = jax.random.normal(k1, (Bp, C, H, W), jnp.float32)
    xp2 = jax.random.normal(k2, (Bp, C, H, W), jnp.float32)
    p1, p2 = interaction_module(xp1, xp2, w_reduce, w_select,
                                block_bytes_target=160 << 10)
    jax.block_until_ready((p1, p2))
    q1, q2 = _reference(xp1, xp2, w_reduce, w_select)
    assert jnp.allclose(p1, q1, atol=1e-5, rtol=1e-5)
    assert jnp.allclose(p2, q2, atol=1e-5, rtol=1e-5)

    # 3) Two-pass HW-tiled fallback (forced), with a partial last HW tile
    #    (HW = 320, hw_tile = 128) to exercise the reduction masking.
    Bf, Hf, Wf = 3, 16, 20
    xf1 = jax.random.normal(k1, (Bf, C, Hf, Wf), jnp.float32)
    xf2 = jax.random.normal(k2, (Bf, C, Hf, Wf), jnp.float32)
    f1, f2 = interaction_module(xf1, xf2, w_reduce, w_select,
                                force_two_pass=True, hw_tile=128)
    jax.block_until_ready((f1, f2))
    g1, g2 = _reference(xf1, xf2, w_reduce, w_select)
    assert jnp.allclose(f1, g1, atol=1e-5, rtol=1e-5)
    assert jnp.allclose(f2, g2, atol=1e-5, rtol=1e-5)

    print("KERNEL_OK")
</pallas_src>

<mosaic_0001>
module attributes {stable_mosaic.version = 11 : i64} {
  func.func @_fused_kernel(%arg0: i32, %arg1: memref<1x32x256xf32, #tpu.memory_space<vmem>>, %arg2: memref<1x32x256xf32, #tpu.memory_space<vmem>>, %arg3: memref<32x8xf32, #tpu.memory_space<vmem>>, %arg4: memref<8x32xf32, #tpu.memory_space<vmem>>, %arg5: memref<8x32xf32, #tpu.memory_space<vmem>>, %arg6: memref<1x32x256xf32, #tpu.memory_space<vmem>>, %arg7: memref<1x32x256xf32, #tpu.memory_space<vmem>>) attributes {dimension_semantics = [#tpu.dimension_semantics<parallel>], iteration_bounds = array<i64: 2>, scalar_prefetch = 0 : i64, scratch_operands = 0 : i64, tpu.core_type = #tpu.core_type<tc>, window_params = [{transform_indices = @transform_0, window_bounds = array<i64: 1, 32, 256>}, {transform_indices = @transform_1, window_bounds = array<i64: 1, 32, 256>}, {pipeline_mode = #tpu.pipeline_mode<synchronous>, transform_indices = @transform_2, window_bounds = array<i64: 32, 8>}, {pipeline_mode = #tpu.pipeline_mode<synchronous>, transform_indices = @transform_3, window_bounds = array<i64: 8, 32>}, {pipeline_mode = #tpu.pipeline_mode<synchronous>, transform_indices = @transform_4, window_bounds = array<i64: 8, 32>}, {transform_indices = @transform_5, window_bounds = array<i64: 1, 32, 256>}, {transform_indices = @transform_6, window_bounds = array<i64: 1, 32, 256>}]} {
    %c0 = arith.constant 0 : index
    %c0_0 = arith.constant 0 : index
    %c0_1 = arith.constant 0 : index
    %0 = vector.load %arg1[%c0, %c0_0, %c0_1] : memref<1x32x256xf32, #tpu.memory_space<vmem>>, vector<1x32x256xf32>
    %c0_2 = arith.constant 0 : index
    %c0_3 = arith.constant 0 : index
    %c0_4 = arith.constant 0 : index
    %1 = vector.load %arg2[%c0_2, %c0_3, %c0_4] : memref<1x32x256xf32, #tpu.memory_space<vmem>>, vector<1x32x256xf32>
    %cst = arith.constant dense<0.000000e+00> : vector<1x32xf32>
    %2 = vector.multi_reduction <add>, %0, %cst [2] : vector<1x32x256xf32> to vector<1x32xf32>
    %cst_5 = arith.constant dense<0.000000e+00> : vector<1x32xf32>
    %3 = vector.multi_reduction <add>, %1, %cst_5 [2] : vector<1x32x256xf32> to vector<1x32xf32>
    %4 = arith.addf %2, %3 : vector<1x32xf32>
    %cst_6 = arith.constant 3.906250e-03 : f32
    %5 = vector.broadcast %cst_6 : f32 to vector<1x32xf32>
    %6 = arith.mulf %4, %5 : vector<1x32xf32>
    %c0_7 = arith.constant 0 : index
    %c0_8 = arith.constant 0 : index
    %7 = vector.load %arg3[%c0_7, %c0_8] : memref<32x8xf32, #tpu.memory_space<vmem>>, vector<32x8xf32>
    %cst_9 = arith.constant dense<0.000000e+00> : vector<1x8xf32>
    %8 = tpu.matmul %6, %7, %cst_9 {dimension_numbers = #tpu.dot_dimension_numbers<[1], [0], [0], [1], [0, 0, 1, 1], [], []>} : vector<1x32xf32>, vector<32x8xf32>, vector<1x8xf32> -> vector<1x8xf32>
    %cst_10 = arith.constant 0.000000e+00 : f32
    %9 = vector.broadcast %cst_10 : f32 to vector<1x8xf32>
    %10 = arith.maximumf %8, %9 : vector<1x8xf32>
    %c0_11 = arith.constant 0 : index
    %c0_12 = arith.constant 0 : index
    %11 = vector.load %arg4[%c0_11, %c0_12] : memref<8x32xf32, #tpu.memory_space<vmem>>, vector<8x32xf32>
    %cst_13 = arith.constant dense<0.000000e+00> : vector<1x32xf32>
    %12 = tpu.matmul %10, %11, %cst_13 {dimension_numbers = #tpu.dot_dimension_numbers<[1], [0], [0], [1], [0, 0, 1, 1], [], []>} : vector<1x8xf32>, vector<8x32xf32>, vector<1x32xf32> -> vector<1x32xf32>
    %13 = arith.negf %12 : vector<1x32xf32>
    %14 = math.exp %13 : vector<1x32xf32>
    %cst_14 = arith.constant 1.000000e+00 : f32
    %15 = vector.broadcast %cst_14 : f32 to vector<1x32xf32>
    %16 = arith.addf %15, %14 : vector<1x32xf32>
    %17 = arith.divf %15, %16 : vector<1x32xf32>
    %c0_15 = arith.constant 0 : index
    %c0_16 = arith.constant 0 : index
    %18 = vector.load %arg5[%c0_15, %c0_16] : memref<8x32xf32, #tpu.memory_space<vmem>>, vector<8x32xf32>
    %cst_17 = arith.constant dense<0.000000e+00> : vector<1x32xf32>
    %19 = tpu.matmul %10, %18, %cst_17 {dimension_numbers = #tpu.dot_dimension_numbers<[1], [0], [0], [1], [0, 0, 1, 1], [], []>} : vector<1x8xf32>, vector<8x32xf32>, vector<1x32xf32> -> vector<1x32xf32>
    %20 = arith.negf %19 : vector<1x32xf32>
    %21 = math.exp %20 : vector<1x32xf32>
    %cst_18 = arith.constant 1.000000e+00 : f32
    %22 = vector.broadcast %cst_18 : f32 to vector<1x32xf32>
    %23 = arith.addf %22, %21 : vector<1x32xf32>
    %24 = arith.divf %22, %23 : vector<1x32xf32>
    %25 = vector.shape_cast %17 : vector<1x32xf32> to vector<1x32x1xf32>
    %26 = vector.broadcast %25 : vector<1x32x1xf32> to vector<1x32x256xf32>
    %27 = arith.mulf %0, %26 : vector<1x32x256xf32>
    %c0_19 = arith.constant 0 : index
    %c0_20 = arith.constant 0 : index
    %c0_21 = arith.constant 0 : index
    %28 = vector.load %arg6[%c0_19, %c0_20, %c0_21] : memref<1x32x256xf32, #tpu.memory_space<vmem>>, vector<1x32x256xf32>
    tpu.vector_store %arg6[%c0_19, %c0_20, %c0_21], %27 {strides = array<i32>} : memref<1x32x256xf32, #tpu.memory_space<vmem>>, vector<1x32x256xf32>,
    %29 = vector.shape_cast %24 : vector<1x32xf32> to vector<1x32x1xf32>
    %30 = vector.broadcast %29 : vector<1x32x1xf32> to vector<1x32x256xf32>
    %31 = arith.mulf %1, %30 : vector<1x32x256xf32>
    %c0_22 = arith.constant 0 : index
    %c0_23 = arith.constant 0 : index
    %c0_24 = arith.constant 0 : index
    %32 = vector.load %arg7[%c0_22, %c0_23, %c0_24] : memref<1x32x256xf32, #tpu.memory_space<vmem>>, vector<1x32x256xf32>
    tpu.vector_store %arg7[%c0_22, %c0_23, %c0_24], %31 {strides = array<i32>} : memref<1x32x256xf32, #tpu.memory_space<vmem>>, vector<1x32x256xf32>,
    return
  }
  func.func @transform_0(%arg0: i32) -> (i32, i32, i32) {
    %c0_i32 = arith.constant 0 : i32
    %c0_i32_0 = arith.constant 0 : i32
    %c0_i32_1 = arith.constant 0 : i32
    return %arg0, %c0_i32, %c0_i32_0 : i32, i32, i32
  }
  func.func @transform_1(%arg0: i32) -> (i32, i32, i32) {
    %c0_i32 = arith.constant 0 : i32
    %c0_i32_0 = arith.constant 0 : i32
    %c0_i32_1 = arith.constant 0 : i32
    return %arg0, %c0_i32, %c0_i32_0 : i32, i32, i32
  }
  func.func @transform_2(%arg0: i32) -> (i32, i32) {
    %c0_i32 = arith.constant 0 : i32
    %c0_i32_0 = arith.constant 0 : i32
    %c0_i32_1 = arith.constant 0 : i32
    return %c0_i32, %c0_i32_0 : i32, i32
  }
  func.func @transform_3(%arg0: i32) -> (i32, i32) {
    %c0_i32 = arith.constant 0 : i32
    %c0_i32_0 = arith.constant 0 : i32
    %c0_i32_1 = arith.constant 0 : i32
    return %c0_i32, %c0_i32_0 : i32, i32
  }
  func.func @transform_4(%arg0: i32) -> (i32, i32) {
    %c0_i32 = arith.constant 0 : i32
    %c0_i32_0 = arith.constant 0 : i32
    %c0_i32_1 = arith.constant 0 : i32
    return %c0_i32, %c0_i32_0 : i32, i32
  }
  func.func @transform_5(%arg0: i32) -> (i32, i32, i32) {
    %c0_i32 = arith.constant 0 : i32
    %c0_i32_0 = arith.constant 0 : i32
    %c0_i32_1 = arith.constant 0 : i32
    return %arg0, %c0_i32, %c0_i32_0 : i32, i32, i32
  }
  func.func @transform_6(%arg0: i32) -> (i32, i32, i32) {
    %c0_i32 = arith.constant 0 : i32
    %c0_i32_0 = arith.constant 0 : i32
    %c0_i32_1 = arith.constant 0 : i32
    return %arg0, %c0_i32, %c0_i32_0 : i32, i32, i32
  }
}

</mosaic_0001>

<llo_original>
// kernel: tpu_custom_call.1
$region0: #{tpu_custom_call.1}
  #allocation0 [shape = 'u32[]', space=smem, size = 0x4, offset = 0x4, fixed_abs, tag = 'smem constant byte address 0x4 - core index']
  #allocation1 [shape = 'u32[144,128]{1,0:T(1,128)}', space=vmem, size = 0x12000, scoped, tag = 'internal scratch']
  %s0 = inlined_call_operand.hbm [shape: f32[2,32,256], index: 0, kind: input, shape index: {}]
  %s1 = inlined_call_operand.hbm [shape: f32[2,32,256], index: 1, kind: input, shape index: {}]
  %s2 = inlined_call_operand.vmem [shape: f32[32,8], index: 2, kind: input, shape index: {}]
  %s3 = inlined_call_operand.vmem [shape: f32[8,32], index: 3, kind: input, shape index: {}]
  %s4 = inlined_call_operand.vmem [shape: f32[8,32], index: 4, kind: input, shape index: {}]
  %s5 = inlined_call_operand.hbm [shape: f32[2,32,256], index: 5, kind: output, shape index: {0}]
  %s6 = inlined_call_operand.hbm [shape: f32[2,32,256], index: 6, kind: output, shape index: {1}]
  %7 = xla_tuple %s5, %s6
  %s8 = sld [smem:[#allocation0]]
  $region69: #{tpu_custom_call.1} parent=0
    _
  %s10 = ssub.s32 1, %s8
  %s11 = scalar_select 0, %s10, %s8
  $region1: #{tpu_custom_call.1} parent=0
    #allocation2 [shape = 'u8[65536]{0}', space=vmem, size = 0x10000, scoped, tag = 'input window, operand 0']
    #allocation3 [shape = 's32[2]{0}', space=sflag, size = 0x8, scoped, tag = 'scoped memory for tpu_custom_call.1']
    #allocation4 [shape = 's32[2]{0}', space=sflag, size = 0x8, scoped, tag = 'scoped memory for tpu_custom_call.1']
    #allocation5 [shape = 'u8[65536]{0}', space=vmem, size = 0x10000, scoped, tag = 'input window, operand 1']
    #allocation6 [shape = 's32[2]{0}', space=sflag, size = 0x8, scoped, tag = 'scoped memory for tpu_custom_call.1']
    #allocation7 [shape = 'u8[65536]{0}', space=vmem, size = 0x10000, scoped, tag = 'output window, operand 0']
    #allocation8 [shape = 'u8[65536]{0}', space=vmem, size = 0x10000, scoped, tag = 'output window, operand 1']
    #allocation9 [shape = 's32[2]{0}', space=sflag, size = 0x8, scoped, tag = 'scoped memory for tpu_custom_call.1']
    %12 = vsyncpa [#allocation3], 0
    %s13 = scalar_lea.sflag [#allocation3], 1
    %14 = vsyncpa %s13, 0
    %15 = vsyncpa [#allocation6], 0
    %s16 = scalar_lea.sflag [#allocation6], 1
    %17 = vsyncpa %s16, 0
    %18 = vsyncpa [#allocation4], 0
    %s19 = scalar_lea.sflag [#allocation4], 1
    %20 = vsyncpa %s19, 0
    %21 = vsyncpa [#allocation9], 0
    %s22 = scalar_lea.sflag [#allocation9], 1
    %23 = vsyncpa %s22, 0
    loop: start=0, step=1, limit=4
    $region2: #{tpu_custom_call.1} parent=1 // loop_pre_header
      _
    $region3: #{tpu_custom_call.1} parent=1 // loop_header
      %s25 = sphi 0, %s29
      %p26 = scmp.ge.s32.totalorder %s25, 4
      %s35 = sphi 0, %s37
      %s38 = sphi 0, %s35
      %s39 = sphi 0, %s38
      %s55 = sphi 0, %s39
      %s61 = sphi 0, %s63
      %s64 = sphi 0, %s61
      %s65 = sphi 0, %s64
      %s81 = sphi 0, %s65
      %s85 = sphi 0, %s85
      %s87 = sphi 0, %s85
      %s88 = sphi 0, %s87
      %s102 = sphi 0, %s88
      %s106 = sphi 0, %s106
      %s108 = sphi 0, %s106
      %s109 = sphi 0, %s108
      %s123 = sphi 0, %s109
      %s127 = sphi 0, %s127
      %s129 = sphi 0, %s127
      %s130 = sphi 0, %s129
      %s144 = sphi 0, %s130
      %s150 = sphi 0, %s152
      %s153 = sphi 0, %s150
      %s154 = sphi 0, %s153
      %s170 = sphi 0, %s154
      %s176 = sphi 0, %s178
      %s179 = sphi 0, %s176
      %s180 = sphi 0, %s179
      %s196 = sphi 0, %s180
    $region4: #{tpu_custom_call.1} parent=1 // loop_header_branch
      %28 = sbr.rel (%p26) target = $region8
    $region5: #{tpu_custom_call.1} parent=1 // loop_body
      %s30 = ssub.s32 %s25, 1
      %s31 = ssub.s32 %s25, 2
      %s32 = sadd.s32 %s25, 1
      %s33 = ssub.s32 %s25, %s32
      %p34 = scmp.eq.s32.totalorder %s33, 0
      %s36 = sadd.s32 %s35, 1
      %s37 = scalar_select %p34, %s35, %s36
      %p40 = pneg %p34
      %p41 = scmp.eq.s32.totalorder %s25, 1
      %p42 = por %p40, %p41
      %p43 = scmp.ne.s32.totalorder %s35, %s38
      %p44 = scmp.eq.s32.totalorder %s25, 0
      %p45 = por %p43, %p44
      %p46 = scmp.ne.s32.totalorder %s35, %s38
      %p47 = scmp.eq.s32.totalorder %s30, 1
      %p48 = por %p46, %p47
      %p49 = scmp.ne.s32.totalorder %s38, %s39
      %p50 = scmp.eq.s32.totalorder %s30, 0
      %p51 = por %p49, %p50
      %p52 = scmp.ne.s32.totalorder %s38, %s39
      %p53 = scmp.eq.s32.totalorder %s31, 1
      %p54 = por %p52, %p53
      %p56 = scmp.ne.s32.totalorder %s39, %s55
      %p57 = scmp.eq.s32.totalorder %s31, 0
      %p58 = por %p56, %p57
      %s59 = ssub.s32 %s25, %s32
      %p60 = scmp.eq.s32.totalorder %s59, 0
      %s62 = sadd.s32 %s61, 1
      %s63 = scalar_select %p60, %s61, %s62
      %p66 = pneg %p60
      %p67 = scmp.eq.s32.totalorder %s25, 1
      %p68 = por %p66, %p67
      %p69 = scmp.ne.s32.totalorder %s61, %s64
      %p70 = scmp.eq.s32.totalorder %s25, 0
      %p71 = por %p69, %p70
      %p72 = scmp.ne.s32.totalorder %s61, %s64
      %p73 = scmp.eq.s32.totalorder %s30, 1
      %p74 = por %p72, %p73
      %p75 = scmp.ne.s32.totalorder %s64, %s65
      %p76 = scmp.eq.s32.totalorder %s30, 0
      %p77 = por %p75, %p76
      %p78 = scmp.ne.s32.totalorder %s64, %s65
      %p79 = scmp.eq.s32.totalorder %s31, 1
      %p80 = por %p78, %p79
      %p82 = scmp.ne.s32.totalorder %s65, %s81
      %p83 = scmp.eq.s32.totalorder %s31, 0
      %p84 = por %p82, %p83
      %s86 = sadd.s32 %s85, 1
      %p89 = scmp.eq.s32.totalorder %s25, 1
      %p90 = scmp.ne.s32.totalorder %s85, %s87
      %p91 = scmp.eq.s32.totalorder %s25, 0
      %p92 = por %p90, %p91
      %p93 = scmp.ne.s32.totalorder %s85, %s87
      %p94 = scmp.eq.s32.totalorder %s30, 1
      %p95 = por %p93, %p94
      %p96 = scmp.ne.s32.totalorder %s87, %s88
      %p97 = scmp.eq.s32.totalorder %s30, 0
      %p98 = por %p96, %p97
      %p99 = scmp.ne.s32.totalorder %s87, %s88
      %p100 = scmp.eq.s32.totalorder %s31, 1
      %p101 = por %p99, %p100
      %p103 = scmp.ne.s32.totalorder %s88, %s102
      %p104 = scmp.eq.s32.totalorder %s31, 0
      %p105 = por %p103, %p104
      %s107 = sadd.s32 %s106, 1
      %p110 = scmp.eq.s32.totalorder %s25, 1
      %p111 = scmp.ne.s32.totalorder %s106, %s108
      %p112 = scmp.eq.s32.totalorder %s25, 0
      %p113 = por %p111, %p112
      %p114 = scmp.ne.s32.totalorder %s106, %s108
      %p115 = scmp.eq.s32.totalorder %s30, 1
      %p116 = por %p114, %p115
      %p117 = scmp.ne.s32.totalorder %s108, %s109
      %p118 = scmp.eq.s32.totalorder %s30, 0
      %p119 = por %p117, %p118
      %p120 = scmp.ne.s32.totalorder %s108, %s109
      %p121 = scmp.eq.s32.totalorder %s31, 1
      %p122 = por %p120, %p121
      %p124 = scmp.ne.s32.totalorder %s109, %s123
      %p125 = scmp.eq.s32.totalorder %s31, 0
      %p126 = por %p124, %p125
      %s128 = sadd.s32 %s127, 1
      %p131 = scmp.eq.s32.totalorder %s25, 1
      %p132 = scmp.ne.s32.totalorder %s127, %s129
      %p133 = scmp.eq.s32.totalorder %s25, 0
      %p134 = por %p132, %p133
      %p135 = scmp.ne.s32.totalorder %s127, %s129
      %p136 = scmp.eq.s32.totalorder %s30, 1
      %p137 = por %p135, %p136
      %p138 = scmp.ne.s32.totalorder %s129, %s130
      %p139 = scmp.eq.s32.totalorder %s30, 0
      %p140 = por %p138, %p139
      %p141 = scmp.ne.s32.totalorder %s129, %s130
      %p142 = scmp.eq.s32.totalorder %s31, 1
      %p143 = por %p141, %p142
      %p145 = scmp.ne.s32.totalorder %s130, %s144
      %p146 = scmp.eq.s32.totalorder %s31, 0
      %p147 = por %p145, %p146
      %s148 = ssub.s32 %s25, %s32
      %p149 = scmp.eq.s32.totalorder %s148, 0
      %s151 = sadd.s32 %s150, 1
      %s152 = scalar_select %p149, %s150, %s151
      %p155 = pneg %p149
      %p156 = scmp.eq.s32.totalorder %s25, 1
      %p157 = por %p155, %p156
      %p158 = scmp.ne.s32.totalorder %s150, %s153
      %p159 = scmp.eq.s32.totalorder %s25, 0
      %p160 = por %p158, %p159
      %p161 = scmp.ne.s32.totalorder %s150, %s153
      %p162 = scmp.eq.s32.totalorder %s30, 1
      %p163 = por %p161, %p162
      %p164 = scmp.ne.s32.totalorder %s153, %s154
      %p165 = scmp.eq.s32.totalorder %s30, 0
      %p166 = por %p164, %p165
      %p167 = scmp.ne.s32.totalorder %s153, %s154
      %p168 = scmp.eq.s32.totalorder %s31, 1
      %p169 = por %p167, %p168
      %p171 = scmp.ne.s32.totalorder %s154, %s170
      %p172 = scmp.eq.s32.totalorder %s31, 0
      %p173 = por %p171, %p172
      %s174 = ssub.s32 %s25, %s32
      %p175 = scmp.eq.s32.totalorder %s174, 0
      %s177 = sadd.s32 %s176, 1
      %s178 = scalar_select %p175, %s176, %s177
      %p181 = pneg %p175
      %p182 = scmp.eq.s32.totalorder %s25, 1
      %p183 = por %p181, %p182
      %p184 = scmp.ne.s32.totalorder %s176, %s179
      %p185 = scmp.eq.s32.totalorder %s25, 0
      %p186 = por %p184, %p185
      %p187 = scmp.ne.s32.totalorder %s176, %s179
      %p188 = scmp.eq.s32.totalorder %s30, 1
      %p189 = por %p187, %p188
      %p190 = scmp.ne.s32.totalorder %s179, %s180
      %p191 = scmp.eq.s32.totalorder %s30, 0
      %p192 = por %p190, %p191
      %p193 = scmp.ne.s32.totalorder %s179, %s180
      %p194 = scmp.eq.s32.totalorder %s31, 1
      %p195 = por %p193, %p194
      %p197 = scmp.ne.s32.totalorder %s180, %s196
      %p198 = scmp.eq.s32.totalorder %s31, 0
      %p199 = por %p197, %p198
      %p200 = scmp.le.s32.totalorder 1, %s25
      %p201 = scmp.lt.s32.totalorder %s25, 3
      %p202 = pnand %p200, %p201
      %p203 = pneg %p202
      // Predicated region
      $region9: #{tpu_custom_call.1} parent=5 // pred_check
        _
      $region10: #{tpu_custom_call.1} parent=5 // pred_check_branch
        %205 = sbr.rel (%p202) target = $region12
      $region11: #{tpu_custom_call.1} parent=5 // pred_region
        %s206 = ssub.s32 %s25, 1
        // Predicated region
        $region13: #{tpu_custom_call.1} parent=11 // pred_check
          %p207 = pneg %p98
        $region14: #{tpu_custom_call.1} parent=11 // pred_check_branch
          %209 = sbr.rel (%p207) target = $region16
        $region15: #{tpu_custom_call.1} parent=11 // pred_region
          _
        $region16: #{tpu_custom_call.1} parent=11 // pred_fallthru
          _
        // Predicated region
        $region17: #{tpu_custom_call.1} parent=11 // pred_check
          %p210 = pneg %p119
        $region18: #{tpu_custom_call.1} parent=11 // pred_check_branch
          %212 = sbr.rel (%p210) target = $region20
        $region19: #{tpu_custom_call.1} parent=11 // pred_region
          _
        $region20: #{tpu_custom_call.1} parent=11 // pred_fallthru
          _
        // Predicated region
        $region21: #{tpu_custom_call.1} parent=11 // pred_check
          %p213 = pneg %p140
        $region22: #{tpu_custom_call.1} parent=11 // pred_check_branch
          %215 = sbr.rel (%p213) target = $region24
        $region23: #{tpu_custom_call.1} parent=11 // pred_region
          _
        $region24: #{tpu_custom_call.1} parent=11 // pred_fallthru
          _
      $region12: #{tpu_custom_call.1} parent=5 // pred_fallthru
        _
      %p216 = scmp.lt.s32.totalorder %s25, 2
      // Predicated region
      $region25: #{tpu_custom_call.1} parent=5 // pred_check
        %p217 = pneg %p216
      $region26: #{tpu_custom_call.1} parent=5 // pred_check_branch
        %219 = sbr.rel (%p217) target = $region28
      $region27: #{tpu_custom_call.1} parent=5 // pred_region
        // Predicated region
        $region29: #{tpu_custom_call.1} parent=27 // pred_check
          %p220 = pneg %p45
        $region30: #{tpu_custom_call.1} parent=27 // pred_check_branch
          %222 = sbr.rel (%p220) target = $region32
        $region31: #{tpu_custom_call.1} parent=27 // pred_region
          %s223 = sand.u32 %s35, 1
          %s224 = scalar_lea.sflag [#allocation3], %s223
          %s225 = sand.u32 %s35, 1
          %s226 = smul.addr %s225, 64
          %s227 = scalar_lea.vmem [#allocation2], %s226
          %s229 = ssub.s32 1024, 1024
          %230 = vsyncadd %s224, %s229
          %s231 = smul.addr %s25, 8
          %s232 = smul.addr %s231, 128
          %s233 = scalar_lea.hbm %s0, %s232
          %s234 = sshll.u32 %s227, 4
          %s235 = int_to_ptr.vmem [resolvable:$true] %s234
          %240 = dma.hbm_to_vmem [thread:$0]  %s233, 1024, %s235, %s224, 256, 256, 16
        $region32: #{tpu_custom_call.1} parent=27 // pred_fallthru
          _
        // Predicated region
        $region33: #{tpu_custom_call.1} parent=27 // pred_check
          %p241 = pneg %p71
        $region34: #{tpu_custom_call.1} parent=27 // pred_check_branch
          %243 = sbr.rel (%p241) target = $region36
        $region35: #{tpu_custom_call.1} parent=27 // pred_region
          %s244 = sand.u32 %s61, 1
          %s245 = scalar_lea.sflag [#allocation6], %s244
          %s246 = sand.u32 %s61, 1
          %s247 = smul.addr %s246, 64
          %s248 = scalar_lea.vmem [#allocation5], %s247
          %s250 = ssub.s32 1024, 1024
          %251 = vsyncadd %s245, %s250
          %s252 = smul.addr %s25, 8
          %s253 = smul.addr %s252, 128
          %s254 = scalar_lea.hbm %s1, %s253
          %s255 = sshll.u32 %s248, 4
          %s256 = int_to_ptr.vmem [resolvable:$true] %s255
          %261 = dma.hbm_to_vmem [thread:$0]  %s254, 1024, %s256, %s245, 256, 256, 16
        $region36: #{tpu_custom_call.1} parent=27 // pred_fallthru
          _
      $region28: #{tpu_custom_call.1} parent=5 // pred_fallthru
        _
      %p262 = scmp.le.s32.totalorder 1, %s25
      %p263 = scmp.lt.s32.totalorder %s25, 3
      %p264 = pnand %p262, %p263
      %p265 = pneg %p264
      // Predicated region
      $region37: #{tpu_custom_call.1} parent=5 // pred_check
        _
      $region38: #{tpu_custom_call.1} parent=5 // pred_check_branch
        %267 = sbr.rel (%p264) target = $region40
      $region39: #{tpu_custom_call.1} parent=5 // pred_region
        %s268 = ssub.s32 %s25, 1
        %s269 = sand.u32 %s38, 1
        %s270 = scalar_lea.sflag [#allocation3], %s269
        %s271 = sand.u32 %s38, 1
        %s272 = smul.addr %s271, 64
        %s273 = scalar_lea.vmem [#allocation2], %s272
        // Predicated region
        $region41: #{tpu_custom_call.1} parent=39 // pred_check
          %p274 = pneg %p51
        $region42: #{tpu_custom_call.1} parent=39 // pred_check_branch
          %276 = sbr.rel (%p274) target = $region44
        $region43: #{tpu_custom_call.1} parent=39 // pred_region
          %277 = dma.done %s270, 1024
        $region44: #{tpu_custom_call.1} parent=39 // pred_fallthru
          _
        %s278 = sand.u32 %s64, 1
        %s279 = scalar_lea.sflag [#allocation6], %s278
        %s280 = sand.u32 %s64, 1
        %s281 = smul.addr %s280, 64
        %s282 = scalar_lea.vmem [#allocation5], %s281
        // Predicated region
        $region45: #{tpu_custom_call.1} parent=39 // pred_check
          %p283 = pneg %p77
        $region46: #{tpu_custom_call.1} parent=39 // pred_check_branch
          %285 = sbr.rel (%p283) target = $region48
        $region47: #{tpu_custom_call.1} parent=39 // pred_region
          %286 = dma.done %s279, 1024
        $region48: #{tpu_custom_call.1} parent=39 // pred_fallthru
          _
        %s287 = sand.u32 %s38, 1
        %s288 = scalar_lea.sflag [#allocation3], %s287
        %s289 = sand.u32 %s38, 1
        %s290 = smul.addr %s289, 64
        %s291 = scalar_lea.vmem [#allocation2], %s290
        %p292 = pneg %p51
        %p293 = pneg %p48
        %s294 = sand.u32 %s64, 1
        %s295 = scalar_lea.sflag [#allocation6], %s294
        %s296 = sand.u32 %s64, 1
        %s297 = smul.addr %s296, 64
        %s298 = scalar_lea.vmem [#allocation5], %s297
        %p299 = pneg %p77
        %p300 = pneg %p74
        %p301 = pneg %p98
        %p302 = pneg %p95
        %p303 = pneg %p119
        %p304 = pneg %p116
        %p305 = pneg %p140
        %p306 = pneg %p137
        %p307 = pneg %p166
        %p308 = pneg %p163
        %s309 = sand.u32 %s153, 1
        %s310 = scalar_lea.sflag [#allocation4], %s309
        %s311 = sand.u32 %s153, 1
        %s312 = smul.addr %s311, 64
        %s313 = scalar_lea.vmem [#allocation7], %s312
        %p314 = pneg %p192
        %p315 = pneg %p189
        %s316 = sand.u32 %s179, 1
        %s317 = scalar_lea.sflag [#allocation9], %s316
        %s318 = sand.u32 %s179, 1
        %s319 = smul.addr %s318, 64
        %s320 = scalar_lea.vmem [#allocation8], %s319
        %v321 = vld [vmem:[%s273] sm:$0xff]
        %v322 = vld [vmem:[%s273 + $0x8] sm:$0xff]
        %v323 = vld [vmem:[%s273 + $0x10] sm:$0xff]
        %v324 = vld [vmem:[%s273 + $0x18] sm:$0xff]
        %v325 = vld [vmem:[%s273 + $0x20] sm:$0xff]
        %v326 = vld [vmem:[%s273 + $0x28] sm:$0xff]
        %v327 = vld [vmem:[%s273 + $0x30] sm:$0xff]
        %v328 = vld [vmem:[%s273 + $0x38] sm:$0xff]
        %v329 = vld [vmem:[%s282] sm:$0xff]
        %v330 = vld [vmem:[%s282 + $0x8] sm:$0xff]
        %v331 = vld [vmem:[%s282 + $0x10] sm:$0xff]
        %v332 = vld [vmem:[%s282 + $0x18] sm:$0xff]
        %v333 = vld [vmem:[%s282 + $0x20] sm:$0xff]
        %v334 = vld [vmem:[%s282 + $0x28] sm:$0xff]
        %v335 = vld [vmem:[%s282 + $0x30] sm:$0xff]
        %v336 = vld [vmem:[%s282 + $0x38] sm:$0xff]
        %v337 = vadd.f32 %v321, %v322
        %338 = vadd.xlane.f32.xlu0 %v337
        %v339 = vpop.xlane.xlu0 %338
        %v340 = vadd.f32 %v323, %v324
        %341 = vadd.xlane.f32.xlu0 %v340
        %v342 = vpop.xlane.xlu0 %341
        %v343 = vadd.f32 %v325, %v326
        %344 = vadd.xlane.f32.xlu0 %v343
        %v345 = vpop.xlane.xlu0 %344
        %v346 = vadd.f32 %v327, %v328
        %347 = vadd.xlane.f32.xlu0 %v346
        %v348 = vpop.xlane.xlu0 %347
        %v349 = vadd.f32 %v329, %v330
        %350 = vadd.xlane.f32.xlu0 %v349
        %v351 = vpop.xlane.xlu0 %350
        %v352 = vadd.f32 %v331, %v332
        %353 = vadd.xlane.f32.xlu0 %v352
        %v354 = vpop.xlane.xlu0 %353
        %v355 = vadd.f32 %v333, %v334
        %356 = vadd.xlane.f32.xlu0 %v355
        %v357 = vpop.xlane.xlu0 %356
        %v358 = vadd.f32 %v335, %v336
        %359 = vadd.xlane.f32.xlu0 %v358
        %v360 = vpop.xlane.xlu0 %359
        %v361 = vadd.f32 %v339, %v351
        %v362 = vadd.f32 %v342, %v354
        %v363 = vadd.f32 %v345, %v357
        %v364 = vadd.f32 %v348, %v360
        %v365 = vmul.f32 %v361, 0.00390625
        %v366 = vmul.f32 %v362, 0.00390625
        %v367 = vmul.f32 %v363, 0.00390625
        %v368 = vmul.f32 %v364, 0.00390625
        %v369 = vld [vmem:[%s2] sm:$0xff]
        %v370 = vld [vmem:[%s2 + $0x8] sm:$0xff]
        %v371 = vld [vmem:[%s2 + $0x10] sm:$0xff]
        %v372 = vld [vmem:[%s2 + $0x18] sm:$0xff]
        %v377 = vlaneseq
        %v378 = vand.u32 %v377, 127
        %v379 = vlaneseq
        %v380 = vshrl.u32 %v379, 7
        %v381 = vsub.s32 %v378, %v380
        %v382 = vrot.slane %v365, %v381
        %v383 = vadd.s32 %v378, 4294967288
        %v384 = vlaneseq
        %v385 = vshrl.u32 %v384, 7
        %v386 = vsub.s32 %v383, %v385
        %v387 = vrot.slane %v366, %v386
        %vm388 = vcmask 130112
        %v389 = vsel %vm388, %v387, %v382
        %v390 = vadd.s32 %v378, 4294967280
        %v391 = vlaneseq
        %v392 = vshrl.u32 %v391, 7
        %v393 = vsub.s32 %v390, %v392
        %v394 = vrot.slane %v367, %v393
        %vm395 = vcmask 195712
        %v396 = vsel %vm395, %v394, %v389
        %v397 = vadd.s32 %v378, 4294967272
        %v398 = vlaneseq
        %v399 = vshrl.u32 %v398, 7
        %v400 = vsub.s32 %v397, %v399
        %v401 = vrot.slane %v368, %v400
        %vm402 = vcmask 261312
        %v403 = vsel %vm402, %v401, %v396
        %vm404 = vcmask 261120
        %v405 = vsel %vm404, %v403, 0
        %407 = vmatprep.subr.mxu0 0.0
        %408 = vmatpush1.msra.mxu0 0.0
        %409 = vmatprep.subr.mxu0 0.0
        %410 = vmatpush1.msra.mxu0 0.0
        %411 = vmatprep.subr.mxu0 0.0
        %412 = vmatpush1.msra.mxu0 0.0
        %413 = vmatprep.subr.mxu0 0.0
        %414 = vmatpush1.msra.mxu0 0.0
        %415 = vmatprep.subr.mxu0 0.0
        %416 = vmatpush1.msra.mxu0 0.0
        %417 = vmatprep.subr.mxu0 0.0
        %418 = vmatpush1.msra.mxu0 0.0
        %419 = vmatprep.subr.mxu0 0.0
        %420 = vmatpush1.msra.mxu0 0.0
        %421 = vmatprep.subr.mxu0 0.0
        %422 = vmatpush1.msra.mxu0 0.0
        %423 = vmatprep.subr.mxu0 0.0
        %424 = vmatpush1.msra.mxu0 0.0
        %425 = vmatprep.subr.mxu0 0.0
        %426 = vmatpush1.msra.mxu0 0.0
        %427 = vmatprep.subr.mxu0 0.0
        %428 = vmatpush1.msra.mxu0 0.0
        %429 = vmatprep.subr.mxu0 0.0
        %430 = vmatpush1.msra.mxu0 0.0
        %431 = vmatprep.subr.mxu0 0.0
        %432 = vmatpush1.msra.mxu0 %v372
        %433 = vmatprep.subr.mxu0 0.0
        %434 = vmatpush1.msra.mxu0 %v371
        %435 = vmatprep.subr.mxu0 0.0
        %436 = vmatpush1.msra.mxu0 %v370
        %437 = vmatprep.subr.mxu0 0.0
        %438 = vmatpush1.msra.mxu0 %v369
        %439 = vmatprep.subr.mxu0 0.0
        %440 = vmatpush2.msra.mxu0 0.0
        %441 = vmatprep.subr.mxu0 0.0
        %442 = vmatpush2.msra.mxu0 0.0
        %443 = vmatprep.subr.mxu0 0.0
        %444 = vmatpush2.msra.mxu0 0.0
        %445 = vmatprep.subr.mxu0 0.0
        %446 = vmatpush2.msra.mxu0 0.0
        %447 = vmatprep.subr.mxu0 0.0
        %448 = vmatpush2.msra.mxu0 0.0
        %449 = vmatprep.subr.mxu0 0.0
        %450 = vmatpush2.msra.mxu0 0.0
        %451 = vmatprep.subr.mxu0 0.0
        %452 = vmatpush2.msra.mxu0 0.0
        %453 = vmatprep.subr.mxu0 0.0
        %454 = vmatpush2.msra.mxu0 0.0
        %455 = vmatprep.subr.mxu0 0.0
        %456 = vmatpush2.msra.mxu0 0.0
        %457 = vmatprep.subr.mxu0 0.0
        %458 = vmatpush2.msra.mxu0 0.0
        %459 = vmatprep.subr.mxu0 0.0
        %460 = vmatpush2.msra.mxu0 0.0
        %461 = vmatprep.subr.mxu0 0.0
        %462 = vmatpush2.msra.mxu0 0.0
        %463 = vmatprep.subr.mxu0 0.0
        %464 = vmatpush2.msra.mxu0 0.0
        %465 = vmatprep.subr.mxu0 0.0
        %466 = vmatpush2.msra.mxu0 0.0
        %467 = vmatprep.subr.mxu0 0.0
        %468 = vmatpush2.msra.mxu0 0.0
        %469 = vmatprep.subr.mxu0 0.0
        %470 = vmatpush2.msra.mxu0 0.0
        %471 = vmatprep.mubr.f32.mxu0 0.0
        %472 = vmatmul.mubr.f32.gmra.mxu0 %v405
        %v473 = vpop.f32.mrf.mxu0
        %v474 = vadd.f32 0.0, %v473
        %v475 = vpop.f32.mrf.mxu0
        %476 = vdwg.mxu0
        %v477 = vmax.f32 %v474, 0.0
        %v478 = vld [vmem:[%s3] sm:$0xff]
        %vm479 = vcmask 64512
        %v481 = vsel %vm479, %v477, 0
        %483 = vmatprep.subr.mxu0 0.0
        %484 = vmatpush1.msra.mxu0 0.0
        %485 = vmatprep.subr.mxu0 0.0
        %486 = vmatpush1.msra.mxu0 0.0
        %487 = vmatprep.subr.mxu0 0.0
        %488 = vmatpush1.msra.mxu0 0.0
        %489 = vmatprep.subr.mxu0 0.0
        %490 = vmatpush1.msra.mxu0 0.0
        %491 = vmatprep.subr.mxu0 0.0
        %492 = vmatpush1.msra.mxu0 0.0
        %493 = vmatprep.subr.mxu0 0.0
        %494 = vmatpush1.msra.mxu0 0.0
        %495 = vmatprep.subr.mxu0 0.0
        %496 = vmatpush1.msra.mxu0 0.0
        %497 = vmatprep.subr.mxu0 0.0
        %498 = vmatpush1.msra.mxu0 0.0
        %499 = vmatprep.subr.mxu0 0.0
        %500 = vmatpush1.msra.mxu0 0.0
        %501 = vmatprep.subr.mxu0 0.0
        %502 = vmatpush1.msra.mxu0 0.0
        %503 = vmatprep.subr.mxu0 0.0
        %504 = vmatpush1.msra.mxu0 0.0
        %505 = vmatprep.subr.mxu0 0.0
        %506 = vmatpush1.msra.mxu0 0.0
        %507 = vmatprep.subr.mxu0 0.0
        %508 = vmatpush1.msra.mxu0 0.0
        %509 = vmatprep.subr.mxu0 0.0
        %510 = vmatpush1.msra.mxu0 0.0
        %511 = vmatprep.subr.mxu0 0.0
        %512 = vmatpush1.msra.mxu0 0.0
        %513 = vmatprep.subr.mxu0 0.0
        %514 = vmatpush1.msra.mxu0 %v478
        %515 = vmatprep.subr.mxu0 0.0
        %516 = vmatpush2.msra.mxu0 0.0
        %517 = vmatprep.subr.mxu0 0.0
        %518 = vmatpush2.msra.mxu0 0.0
        %519 = vmatprep.subr.mxu0 0.0
        %520 = vmatpush2.msra.mxu0 0.0
        %521 = vmatprep.subr.mxu0 0.0
        %522 = vmatpush2.msra.mxu0 0.0
        %523 = vmatprep.subr.mxu0 0.0
        %524 = vmatpush2.msra.mxu0 0.0
        %525 = vmatprep.subr.mxu0 0.0
        %526 = vmatpush2.msra.mxu0 0.0
        %527 = vmatprep.subr.mxu0 0.0
        %528 = vmatpush2.msra.mxu0 0.0
        %529 = vmatprep.subr.mxu0 0.0
        %530 = vmatpush2.msra.mxu0 0.0
        %531 = vmatprep.subr.mxu0 0.0
        %532 = vmatpush2.msra.mxu0 0.0
        %533 = vmatprep.subr.mxu0 0.0
        %534 = vmatpush2.msra.mxu0 0.0
        %535 = vmatprep.subr.mxu0 0.0
        %536 = vmatpush2.msra.mxu0 0.0
        %537 = vmatprep.subr.mxu0 0.0
        %538 = vmatpush2.msra.mxu0 0.0
        %539 = vmatprep.subr.mxu0 0.0
        %540 = vmatpush2.msra.mxu0 0.0
        %541 = vmatprep.subr.mxu0 0.0
        %542 = vmatpush2.msra.mxu0 0.0
        %543 = vmatprep.subr.mxu0 0.0
        %544 = vmatpush2.msra.mxu0 0.0
        %545 = vmatprep.subr.mxu0 0.0
        %546 = vmatpush2.msra.mxu0 0.0
        %547 = vmatprep.mubr.f32.mxu0 0.0
        %548 = vmatmul.mubr.f32.gmra.mxu0 %v481
        %v549 = vpop.f32.mrf.mxu0
        %v550 = vadd.f32 0.0, %v549
        %v551 = vpop.f32.mrf.mxu0
        %552 = vdwg.mxu0
        %v553 = vxor.u32 %v550, 2147483648
        %v554 = vmul.f32 %v553, 1.442695
        %v555 = vpow.pop %v554
        %v556 = vadd.f32 %v555, 1.0
        %v557 = vrcp.pop %v556
        %v558 = vmul.f32 1.0, %v557
        %v559 = vld [vmem:[%s4] sm:$0xff]
        %560 = vmatprep.subr.mxu0 0.0
        %561 = vmatpush1.msra.mxu0 0.0
        %562 = vmatprep.subr.mxu0 0.0
        %563 = vmatpush1.msra.mxu0 0.0
        %564 = vmatprep.subr.mxu0 0.0
        %565 = vmatpush1.msra.mxu0 0.0
        %566 = vmatprep.subr.mxu0 0.0
        %567 = vmatpush1.msra.mxu0 0.0
        %568 = vmatprep.subr.mxu0 0.0
        %569 = vmatpush1.msra.mxu0 0.0
        %570 = vmatprep.subr.mxu0 0.0
        %571 = vmatpush1.msra.mxu0 0.0
        %572 = vmatprep.subr.mxu0 0.0
        %573 = vmatpush1.msra.mxu0 0.0
        %574 = vmatprep.subr.mxu0 0.0
        %575 = vmatpush1.msra.mxu0 0.0
        %576 = vmatprep.subr.mxu0 0.0
        %577 = vmatpush1.msra.mxu0 0.0
        %578 = vmatprep.subr.mxu0 0.0
        %579 = vmatpush1.msra.mxu0 0.0
        %580 = vmatprep.subr.mxu0 0.0
        %581 = vmatpush1.msra.mxu0 0.0
        %582 = vmatprep.subr.mxu0 0.0
        %583 = vmatpush1.msra.mxu0 0.0
        %584 = vmatprep.subr.mxu0 0.0
        %585 = vmatpush1.msra.mxu0 0.0
        %586 = vmatprep.subr.mxu0 0.0
        %587 = vmatpush1.msra.mxu0 0.0
        %588 = vmatprep.subr.mxu0 0.0
        %589 = vmatpush1.msra.mxu0 0.0
        %590 = vmatprep.subr.mxu0 0.0
        %591 = vmatpush1.msra.mxu0 %v559
        %592 = vmatprep.subr.mxu0 0.0
        %593 = vmatpush2.msra.mxu0 0.0
        %594 = vmatprep.subr.mxu0 0.0
        %595 = vmatpush2.msra.mxu0 0.0
        %596 = vmatprep.subr.mxu0 0.0
        %597 = vmatpush2.msra.mxu0 0.0
        %598 = vmatprep.subr.mxu0 0.0
        %599 = vmatpush2.msra.mxu0 0.0
        %600 = vmatprep.subr.mxu0 0.0
        %601 = vmatpush2.msra.mxu0 0.0
        %602 = vmatprep.subr.mxu0 0.0
        %603 = vmatpush2.msra.mxu0 0.0
        %604 = vmatprep.subr.mxu0 0.0
        %605 = vmatpush2.msra.mxu0 0.0
        %606 = vmatprep.subr.mxu0 0.0
        %607 = vmatpush2.msra.mxu0 0.0
        %608 = vmatprep.subr.mxu0 0.0
        %609 = vmatpush2.msra.mxu0 0.0
        %610 = vmatprep.subr.mxu0 0.0
        %611 = vmatpush2.msra.mxu0 0.0
        %612 = vmatprep.subr.mxu0 0.0
        %613 = vmatpush2.msra.mxu0 0.0
        %614 = vmatprep.subr.mxu0 0.0
        %615 = vmatpush2.msra.mxu0 0.0
        %616 = vmatprep.subr.mxu0 0.0
        %617 = vmatpush2.msra.mxu0 0.0
        %618 = vmatprep.subr.mxu0 0.0
        %619 = vmatpush2.msra.mxu0 0.0
        %620 = vmatprep.subr.mxu0 0.0
        %621 = vmatpush2.msra.mxu0 0.0
        %622 = vmatprep.subr.mxu0 0.0
        %623 = vmatpush2.msra.mxu0 0.0
        %624 = vmatprep.mubr.f32.mxu0 0.0
        %625 = vmatmul.mubr.f32.gmra.mxu0 %v481
        %v626 = vpop.f32.mrf.mxu0
        %v627 = vadd.f32 0.0, %v626
        %v628 = vpop.f32.mrf.mxu0
        %629 = vdwg.mxu0
        %v630 = vxor.u32 %v627, 2147483648
        %v631 = vmul.f32 %v630, 1.442695
        %v632 = vpow.pop %v631
        %v633 = vadd.f32 %v632, 1.0
        %v634 = vrcp.pop %v633
        %v635 = vmul.f32 1.0, %v634
        %v636 = vlaneseq
        %v637 = vshrl.u32 %v636, 7
        %v638 = vsub.s32 0, %v637
        %v639 = vrot.slane %v558, %v638
        %641 = vbcast.lane.b32.xlu0 %v639, 256
        %v642 = vpop.permute.xlu0 %641
        %s644 = sor.u32 256, 8
        %645 = vbcast.lane.b32.xlu0 %v639, %s644
        %v646 = vpop.permute.xlu0 %645
        %s648 = sor.u32 256, 16
        %649 = vbcast.lane.b32.xlu0 %v639, %s648
        %v650 = vpop.permute.xlu0 %649
        %s652 = sor.u32 256, 24
        %653 = vbcast.lane.b32.xlu0 %v639, %s652
        %v654 = vpop.permute.xlu0 %653
        %v655 = vmul.f32 %v321, %v642
        %v656 = vmul.f32 %v322, %v642
        %v657 = vmul.f32 %v323, %v646
        %v658 = vmul.f32 %v324, %v646
        %v659 = vmul.f32 %v325, %v650
        %v660 = vmul.f32 %v326, %v650
        %v661 = vmul.f32 %v327, %v654
        %v662 = vmul.f32 %v328, %v654
        %663 = vst [vmem:[%s313] sm:$0xff] %v655
        %664 = vst [vmem:[%s313 + $0x8] sm:$0xff] %v656
        %665 = vst [vmem:[%s313 + $0x10] sm:$0xff] %v657
        %666 = vst [vmem:[%s313 + $0x18] sm:$0xff] %v658
        %667 = vst [vmem:[%s313 + $0x20] sm:$0xff] %v659
        %668 = vst [vmem:[%s313 + $0x28] sm:$0xff] %v660
        %669 = vst [vmem:[%s313 + $0x30] sm:$0xff] %v661
        %670 = vst [vmem:[%s313 + $0x38] sm:$0xff] %v662
        %v671 = vlaneseq
        %v672 = vshrl.u32 %v671, 7
        %v673 = vsub.s32 0, %v672
        %v674 = vrot.slane %v635, %v673
        %676 = vbcast.lane.b32.xlu0 %v674, 256
        %v677 = vpop.permute.xlu0 %676
        %s679 = sor.u32 256, 8
        %680 = vbcast.lane.b32.xlu0 %v674, %s679
        %v681 = vpop.permute.xlu0 %680
        %s683 = sor.u32 256, 16
        %684 = vbcast.lane.b32.xlu0 %v674, %s683
        %v685 = vpop.permute.xlu0 %684
        %s687 = sor.u32 256, 24
        %688 = vbcast.lane.b32.xlu0 %v674, %s687
        %v689 = vpop.permute.xlu0 %688
        %v690 = vmul.f32 %v329, %v677
        %v691 = vmul.f32 %v330, %v677
        %v692 = vmul.f32 %v331, %v681
        %v693 = vmul.f32 %v332, %v681
        %v694 = vmul.f32 %v333, %v685
        %v695 = vmul.f32 %v334, %v685
        %v696 = vmul.f32 %v335, %v689
        %v697 = vmul.f32 %v336, %v689
        %698 = vst [vmem:[%s320] sm:$0xff] %v690
        %699 = vst [vmem:[%s320 + $0x8] sm:$0xff] %v691
        %700 = vst [vmem:[%s320 + $0x10] sm:$0xff] %v692
        %701 = vst [vmem:[%s320 + $0x18] sm:$0xff] %v693
        %702 = vst [vmem:[%s320 + $0x20] sm:$0xff] %v694
        %703 = vst [vmem:[%s320 + $0x28] sm:$0xff] %v695
        %704 = vst [vmem:[%s320 + $0x30] sm:$0xff] %v696
        %705 = vst [vmem:[%s320 + $0x38] sm:$0xff] %v697
        %s706 = sand.u32 %s153, 1
        %s707 = scalar_lea.sflag [#allocation4], %s706
        %s708 = sand.u32 %s153, 1
        %s709 = smul.addr %s708, 64
        %s710 = scalar_lea.vmem [#allocation7], %s709
        %s711 = sand.u32 %s179, 1
        %s712 = scalar_lea.sflag [#allocation9], %s711
        %s713 = sand.u32 %s179, 1
        %s714 = smul.addr %s713, 64
        %s715 = scalar_lea.vmem [#allocation8], %s714
        // Predicated region
        $region49: #{tpu_custom_call.1} parent=39 // pred_check
          %p716 = pneg %p163
        $region50: #{tpu_custom_call.1} parent=39 // pred_check_branch
          %718 = sbr.rel (%p716) target = $region52
        $region51: #{tpu_custom_call.1} parent=39 // pred_region
          %s720 = ssub.s32 1024, 1024
          %721 = vsyncadd %s707, %s720
          %s722 = smul.addr %s30, 8
          %s723 = smul.addr %s722, 128
          %s724 = scalar_lea.hbm %s5, %s723
          %s725 = sshll.u32 %s710, 4
          %s726 = int_to_ptr.vmem [resolvable:$true] %s725
          %731 = dma.vmem_to_hbm [thread:$0]  %s726, 1024, %s724, %s707, 256, 256, 16
        $region52: #{tpu_custom_call.1} parent=39 // pred_fallthru
          _
        // Predicated region
        $region53: #{tpu_custom_call.1} parent=39 // pred_check
          %p732 = pneg %p189
        $region54: #{tpu_custom_call.1} parent=39 // pred_check_branch
          %734 = sbr.rel (%p732) target = $region56
        $region55: #{tpu_custom_call.1} parent=39 // pred_region
          %s736 = ssub.s32 1024, 1024
          %737 = vsyncadd %s712, %s736
          %s738 = smul.addr %s30, 8
          %s739 = smul.addr %s738, 128
          %s740 = scalar_lea.hbm %s6, %s739
          %s741 = sshll.u32 %s715, 4
          %s742 = int_to_ptr.vmem [resolvable:$true] %s741
          %747 = dma.vmem_to_hbm [thread:$0]  %s742, 1024, %s740, %s712, 256, 256, 16
        $region56: #{tpu_custom_call.1} parent=39 // pred_fallthru
          _
      $region40: #{tpu_custom_call.1} parent=5 // pred_fallthru
        _
      %p748 = scmp.le.s32.totalorder 2, %s25
      // Predicated region
      $region57: #{tpu_custom_call.1} parent=5 // pred_check
        %p749 = pneg %p748
      $region58: #{tpu_custom_call.1} parent=5 // pred_check_branch
        %751 = sbr.rel (%p749) target = $region60
      $region59: #{tpu_custom_call.1} parent=5 // pred_region
        %s752 = ssub.s32 %s25, 2
        // Predicated region
        $region61: #{tpu_custom_call.1} parent=59 // pred_check
          %p753 = pneg %p169
        $region62: #{tpu_custom_call.1} parent=59 // pred_check_branch
          %755 = sbr.rel (%p753) target = $region64
        $region63: #{tpu_custom_call.1} parent=59 // pred_region
          %s756 = sand.u32 %s154, 1
          %s757 = scalar_lea.sflag [#allocation4], %s756
          %s758 = sand.u32 %s154, 1
          %s759 = smul.addr %s758, 64
          %s760 = scalar_lea.vmem [#allocation7], %s759
          %761 = dma.done %s757, 1024
        $region64: #{tpu_custom_call.1} parent=59 // pred_fallthru
          _
        // Predicated region
        $region65: #{tpu_custom_call.1} parent=59 // pred_check
          %p762 = pneg %p195
        $region66: #{tpu_custom_call.1} parent=59 // pred_check_branch
          %764 = sbr.rel (%p762) target = $region68
        $region67: #{tpu_custom_call.1} parent=59 // pred_region
          %s765 = sand.u32 %s180, 1
          %s766 = scalar_lea.sflag [#allocation9], %s765
          %s767 = sand.u32 %s180, 1
          %s768 = smul.addr %s767, 64
          %s769 = scalar_lea.vmem [#allocation8], %s768
          %770 = dma.done %s766, 1024
        $region68: #{tpu_custom_call.1} parent=59 // pred_fallthru
          _
      $region60: #{tpu_custom_call.1} parent=5 // pred_fallthru
        _
    $region6: #{tpu_custom_call.1} parent=1 // loop_footer
      %s29 = sadd.s32 1, %s25
    $region7: #{tpu_custom_call.1} parent=1 // loop_footer_branch
      %24 = sbr.rel target = $region3
    $region8: #{tpu_custom_call.1} parent=1 // loop_exit
      _
    %771 = vsyncpa [#allocation3], 1
    %s772 = scalar_lea.sflag [#allocation3], 1
    %773 = vsyncpa %s772, 1
    %774 = vsyncpa [#allocation6], 1
    %s775 = scalar_lea.sflag [#allocation6], 1
    %776 = vsyncpa %s775, 1
    %777 = vsyncpa [#allocation4], 1
    %s778 = scalar_lea.sflag [#allocation4], 1
    %779 = vsyncpa %s778, 1
    %780 = vsyncpa [#allocation9], 1
    %s781 = scalar_lea.sflag [#allocation9], 1
    %782 = vsyncpa %s781, 1

</llo_original>
